<compile_context>
chip_gen: v6e
topology: v6e:2x2x1
jax: 0.10.0
libtpu: 0.0.40
codegen_flags: <defaults>
</compile_context>

<pallas_src>
import functools

import jax
import jax.numpy as jnp
from jax.experimental import pallas as pl
from jax.experimental.pallas import tpu as pltpu


def _se_kernel(x_ref, w1_ref, b1_ref, w2_ref, b2_ref, o_ref, *, nb, inv_hw):
    # x_ref/o_ref: (nb, C, HWp)   w1: (Csq, C)  b1: (Csq, 1)  w2: (C, Csq)  b2: (C, 1)
    w1 = w1_ref[...]
    b1 = b1_ref[...]
    w2 = w2_ref[...]
    b2 = b2_ref[...]
    # Static unroll over the images in this block; each image is an independent
    # small 2-D problem (keeps every op in the well-supported 2-D lowering path).
    for n in range(nb):
        xf = x_ref[n].astype(jnp.float32)                        # (C, HWp)
        # Global average pool (padded lanes are zero, so sum * 1/HW is exact).
        pooled = jnp.sum(xf, axis=-1, keepdims=True) * inv_hw    # (C, 1) f32
        # conv_reduce (1x1 conv == channel matmul) + bias, then SiLU.
        h = jnp.dot(w1, pooled, preferred_element_type=jnp.float32) + b1   # (Csq, 1)
        h = h * jax.nn.sigmoid(h)
        # conv_expand + bias, then sigmoid.
        s = jnp.dot(w2, h, preferred_element_type=jnp.float32) + b2        # (C, 1)
        s = jax.nn.sigmoid(s)
        # Gate the input (broadcast (C,1) over the spatial lanes).
        o_ref[n] = (s * xf).astype(o_ref.dtype)


def _round_up(x, m):
    return (x + m - 1) // m * m


def _pick_images_per_block(n, per_image_bytes,
                           target_bytes=2 * 1024 * 1024, max_unroll=16):
    """Largest divisor of n with block <= ~target bytes (and bounded unroll)."""
    nb = int(max(1, min(n, target_bytes // max(per_image_bytes, 1), max_unroll)))
    while n % nb != 0:
        nb -= 1
    return nb


def se_forward(x_nchw, w_reduce, b_reduce, w_expand, b_expand):
    N, C, H, W = x_nchw.shape
    HW = H * W
    HWp = _round_up(HW, 128)              # lane-dense last dim (multiple of 128)
    Csq = w_reduce.shape[0]

    x = x_nchw.reshape(N, C, HW)
    if HWp != HW:
        # Zero padding keeps the spatial sum exact; padded output lanes are
        # sliced off below.
        x = jnp.pad(x, ((0, 0), (0, 0), (0, HWp - HW)))

    itemsize = jnp.dtype(x.dtype).itemsize
    nb = _pick_images_per_block(N, C * HWp * itemsize)
    grid = (N // nb,)

    b1 = b_reduce.reshape(Csq, 1)
    b2 = b_expand.reshape(C, 1)

    # Advisory cost: this is a tiny, purely memory-bound op.
    flops = 2 * N * (Csq * C + C * Csq) + N * C * HW
    transcendentals = N * (Csq + C)
    bytes_accessed = 2 * N * C * HW * itemsize + (Csq * C + C * Csq + Csq + C) * itemsize
    cost = pl.CostEstimate(flops=flops,
                           transcendentals=transcendentals,
                           bytes_accessed=bytes_accessed)

    kernel = functools.partial(_se_kernel, nb=nb, inv_hw=1.0 / HW)

    out = pl.pallas_call(
        kernel,
        out_shape=jax.ShapeDtypeStruct((N, C, HWp), x.dtype),
        grid_spec=pltpu.PrefetchScalarGridSpec(
            num_scalar_prefetch=0,
            grid=grid,
            in_specs=[
                pl.BlockSpec((nb, C, HWp), lambda i: (i, 0, 0)),   # x (block of images)
                pl.BlockSpec((Csq, C), lambda i: (0, 0)),          # w_reduce (resident)
                pl.BlockSpec((Csq, 1), lambda i: (0, 0)),          # b_reduce
                pl.BlockSpec((C, Csq), lambda i: (0, 0)),          # w_expand (resident)
                pl.BlockSpec((C, 1), lambda i: (0, 0)),            # b_expand
            ],
            out_specs=pl.BlockSpec((nb, C, HWp), lambda i: (i, 0, 0)),
        ),
        compiler_params=pltpu.CompilerParams(
            dimension_semantics=("parallel",),
            vmem_limit_bytes=32 * 1024 * 1024,   # safe on v5e/v6e/v7x for ~2 MiB blocks
        ),
        cost_estimate=cost,
    )(x, w_reduce, b1, w_expand, b2)

    if HWp != HW:
        out = out[:, :, :HW]
    return out.reshape(N, C, H, W)


def se_reference(x, w_reduce, b_reduce, w_expand, b_expand):
    # Plain-JAX reference matching the PyTorch forward.
    pooled = x.mean((2, 3), keepdims=True)                       # (N, C, 1, 1)
    h = jnp.einsum('oc,nchw->nohw', w_reduce, pooled) + b_reduce[None, :, None, None]
    h = h * jax.nn.sigmoid(h)
    s = jnp.einsum('oc,nchw->nohw', w_expand, h) + b_expand[None, :, None, None]
    s = jax.nn.sigmoid(s)
    return s * x


if __name__ == "__main__":
    # Module config: in_planes=8, expand_planes=8, se_ratio=0.25 -> squeeze_planes=2
    in_planes = 8
    expand_planes = 8
    se_ratio = 0.25
    squeeze_planes = int(in_planes * se_ratio)

    N, C, H, W = 2, expand_planes, 16, 16

    key = jax.random.PRNGKey(0)
    kx, k1, k2, k3, k4 = jax.random.split(key, 5)

    x = jax.random.normal(kx, (N, C, H, W), dtype=jnp.float32)
    # 1x1 conv weights stored as (out_channels, in_channels); biases as (out_channels,)
    w_reduce = jax.random.normal(k1, (squeeze_planes, expand_planes), dtype=jnp.float32) * 0.1
    b_reduce = jax.random.normal(k2, (squeeze_planes,), dtype=jnp.float32) * 0.1
    w_expand = jax.random.normal(k3, (expand_planes, squeeze_planes), dtype=jnp.float32) * 0.1
    b_expand = jax.random.normal(k4, (expand_planes,), dtype=jnp.float32) * 0.1

    out = se_forward(x, w_reduce, b_reduce, w_expand, b_expand)
    out = jax.block_until_ready(out)

    ref = se_reference(x, w_reduce, b_reduce, w_expand, b_expand)
    assert out.shape == (N, C, H, W)
    assert jnp.allclose(out, ref, atol=1e-5, rtol=1e-5), "mismatch vs reference"

    print("KERNEL_OK")
</pallas_src>

<mosaic_0001>
module attributes {stable_mosaic.version = 11 : i64} {
  func.func @_se_kernel(%arg0: i32, %arg1: memref<2x8x256xf32, #tpu.memory_space<vmem>>, %arg2: memref<2x8xf32, #tpu.memory_space<vmem>>, %arg3: memref<2x1xf32, #tpu.memory_space<vmem>>, %arg4: memref<8x2xf32, #tpu.memory_space<vmem>>, %arg5: memref<8x1xf32, #tpu.memory_space<vmem>>, %arg6: memref<2x8x256xf32, #tpu.memory_space<vmem>>) attributes {dimension_semantics = [#tpu.dimension_semantics<parallel>], iteration_bounds = array<i64: 1>, scalar_prefetch = 0 : i64, scratch_operands = 0 : i64, tpu.core_type = #tpu.core_type<tc>, window_params = [{transform_indices = @transform_0, window_bounds = array<i64: 2, 8, 256>}, {pipeline_mode = #tpu.pipeline_mode<synchronous>, transform_indices = @transform_1, window_bounds = array<i64: 2, 8>}, {pipeline_mode = #tpu.pipeline_mode<synchronous>, transform_indices = @transform_2, window_bounds = array<i64: 2, 1>}, {pipeline_mode = #tpu.pipeline_mode<synchronous>, transform_indices = @transform_3, window_bounds = array<i64: 8, 2>}, {pipeline_mode = #tpu.pipeline_mode<synchronous>, transform_indices = @transform_4, window_bounds = array<i64: 8, 1>}, {transform_indices = @transform_5, window_bounds = array<i64: 2, 8, 256>}]} {
    %c0 = arith.constant 0 : index
    %c0_0 = arith.constant 0 : index
    %0 = vector.load %arg2[%c0, %c0_0] : memref<2x8xf32, #tpu.memory_space<vmem>>, vector<2x8xf32>
    %c0_1 = arith.constant 0 : index
    %c0_2 = arith.constant 0 : index
    %1 = vector.load %arg3[%c0_1, %c0_2] : memref<2x1xf32, #tpu.memory_space<vmem>>, vector<2x1xf32>
    %c0_3 = arith.constant 0 : index
    %c0_4 = arith.constant 0 : index
    %2 = vector.load %arg4[%c0_3, %c0_4] : memref<8x2xf32, #tpu.memory_space<vmem>>, vector<8x2xf32>
    %c0_5 = arith.constant 0 : index
    %c0_6 = arith.constant 0 : index
    %3 = vector.load %arg5[%c0_5, %c0_6] : memref<8x1xf32, #tpu.memory_space<vmem>>, vector<8x1xf32>
    %c0_7 = arith.constant 0 : index
    %c0_8 = arith.constant 0 : index
    %c0_9 = arith.constant 0 : index
    %4 = vector.load %arg1[%c0_7, %c0_8, %c0_9] : memref<2x8x256xf32, #tpu.memory_space<vmem>>, vector<1x8x256xf32>
    %5 = vector.shape_cast %4 : vector<1x8x256xf32> to vector<8x256xf32>
    %cst = arith.constant dense<0.000000e+00> : vector<8xf32>
    %6 = vector.multi_reduction <add>, %5, %cst [1] : vector<8x256xf32> to vector<8xf32>
    %7 = vector.shape_cast %6 : vector<8xf32> to vector<8x1xf32>
    %cst_10 = arith.constant 3.906250e-03 : f32
    %8 = vector.broadcast %cst_10 : f32 to vector<8x1xf32>
    %9 = arith.mulf %7, %8 : vector<8x1xf32>
    %cst_11 = arith.constant dense<0.000000e+00> : vector<2x1xf32>
    %10 = tpu.matmul %0, %9, %cst_11 {dimension_numbers = #tpu.dot_dimension_numbers<[1], [0], [0], [1], [0, 0, 1, 1], [], []>} : vector<2x8xf32>, vector<8x1xf32>, vector<2x1xf32> -> vector<2x1xf32>
    %11 = arith.addf %10, %1 : vector<2x1xf32>
    %12 = arith.negf %11 : vector<2x1xf32>
    %13 = math.exp %12 : vector<2x1xf32>
    %cst_12 = arith.constant 1.000000e+00 : f32
    %14 = vector.broadcast %cst_12 : f32 to vector<2x1xf32>
    %15 = arith.addf %14, %13 : vector<2x1xf32>
    %16 = arith.divf %14, %15 : vector<2x1xf32>
    %17 = arith.mulf %11, %16 : vector<2x1xf32>
    %cst_13 = arith.constant dense<0.000000e+00> : vector<8x1xf32>
    %18 = tpu.matmul %2, %17, %cst_13 {dimension_numbers = #tpu.dot_dimension_numbers<[1], [0], [0], [1], [0, 0, 1, 1], [], []>} : vector<8x2xf32>, vector<2x1xf32>, vector<8x1xf32> -> vector<8x1xf32>
    %19 = arith.addf %18, %3 : vector<8x1xf32>
    %20 = arith.negf %19 : vector<8x1xf32>
    %21 = math.exp %20 : vector<8x1xf32>
    %cst_14 = arith.constant 1.000000e+00 : f32
    %22 = vector.broadcast %cst_14 : f32 to vector<8x1xf32>
    %23 = arith.addf %22, %21 : vector<8x1xf32>
    %24 = arith.divf %22, %23 : vector<8x1xf32>
    %25 = vector.broadcast %24 : vector<8x1xf32> to vector<8x256xf32>
    %26 = arith.mulf %25, %5 : vector<8x256xf32>
    %c0_15 = arith.constant 0 : index
    %c0_16 = arith.constant 0 : index
    %c0_17 = arith.constant 0 : index
    %27 = vector.load %arg6[%c0_15, %c0_16, %c0_17] : memref<2x8x256xf32, #tpu.memory_space<vmem>>, vector<1x8x256xf32>
    %28 = vector.shape_cast %27 : vector<1x8x256xf32> to vector<8x256xf32>
    %29 = vector.shape_cast %26 : vector<8x256xf32> to vector<1x8x256xf32>
    tpu.vector_store %arg6[%c0_15, %c0_16, %c0_17], %29 {strides = array<i32>} : memref<2x8x256xf32, #tpu.memory_space<vmem>>, vector<1x8x256xf32>,
    %c1 = arith.constant 1 : index
    %c0_18 = arith.constant 0 : index
    %c0_19 = arith.constant 0 : index
    %30 = vector.load %arg1[%c1, %c0_18, %c0_19] : memref<2x8x256xf32, #tpu.memory_space<vmem>>, vector<1x8x256xf32>
    %31 = vector.shape_cast %30 : vector<1x8x256xf32> to vector<8x256xf32>
    %cst_20 = arith.constant dense<0.000000e+00> : vector<8xf32>
    %32 = vector.multi_reduction <add>, %31, %cst_20 [1] : vector<8x256xf32> to vector<8xf32>
    %33 = vector.shape_cast %32 : vector<8xf32> to vector<8x1xf32>
    %cst_21 = arith.constant 3.906250e-03 : f32
    %34 = vector.broadcast %cst_21 : f32 to vector<8x1xf32>
    %35 = arith.mulf %33, %34 : vector<8x1xf32>
    %cst_22 = arith.constant dense<0.000000e+00> : vector<2x1xf32>
    %36 = tpu.matmul %0, %35, %cst_22 {dimension_numbers = #tpu.dot_dimension_numbers<[1], [0], [0], [1], [0, 0, 1, 1], [], []>} : vector<2x8xf32>, vector<8x1xf32>, vector<2x1xf32> -> vector<2x1xf32>
    %37 = arith.addf %36, %1 : vector<2x1xf32>
    %38 = arith.negf %37 : vector<2x1xf32>
    %39 = math.exp %38 : vector<2x1xf32>
    %cst_23 = arith.constant 1.000000e+00 : f32
    %40 = vector.broadcast %cst_23 : f32 to vector<2x1xf32>
    %41 = arith.addf %40, %39 : vector<2x1xf32>
    %42 = arith.divf %40, %41 : vector<2x1xf32>
    %43 = arith.mulf %37, %42 : vector<2x1xf32>
    %cst_24 = arith.constant dense<0.000000e+00> : vector<8x1xf32>
    %44 = tpu.matmul %2, %43, %cst_24 {dimension_numbers = #tpu.dot_dimension_numbers<[1], [0], [0], [1], [0, 0, 1, 1], [], []>} : vector<8x2xf32>, vector<2x1xf32>, vector<8x1xf32> -> vector<8x1xf32>
    %45 = arith.addf %44, %3 : vector<8x1xf32>
    %46 = arith.negf %45 : vector<8x1xf32>
    %47 = math.exp %46 : vector<8x1xf32>
    %cst_25 = arith.constant 1.000000e+00 : f32
    %48 = vector.broadcast %cst_25 : f32 to vector<8x1xf32>
    %49 = arith.addf %48, %47 : vector<8x1xf32>
    %50 = arith.divf %48, %49 : vector<8x1xf32>
    %51 = vector.broadcast %50 : vector<8x1xf32> to vector<8x256xf32>
    %52 = arith.mulf %51, %31 : vector<8x256xf32>
    %c1_26 = arith.constant 1 : index
    %c0_27 = arith.constant 0 : index
    %c0_28 = arith.constant 0 : index
    %53 = vector.load %arg6[%c1_26, %c0_27, %c0_28] : memref<2x8x256xf32, #tpu.memory_space<vmem>>, vector<1x8x256xf32>
    %54 = vector.shape_cast %53 : vector<1x8x256xf32> to vector<8x256xf32>
    %55 = vector.shape_cast %52 : vector<8x256xf32> to vector<1x8x256xf32>
    tpu.vector_store %arg6[%c1_26, %c0_27, %c0_28], %55 {strides = array<i32>} : memref<2x8x256xf32, #tpu.memory_space<vmem>>, vector<1x8x256xf32>,
    return
  }
  func.func @transform_0(%arg0: i32) -> (i32, i32, i32) {
    %c0_i32 = arith.constant 0 : i32
    %c0_i32_0 = arith.constant 0 : i32
    %c0_i32_1 = arith.constant 0 : i32
    return %arg0, %c0_i32, %c0_i32_0 : i32, i32, i32
  }
  func.func @transform_1(%arg0: i32) -> (i32, i32) {
    %c0_i32 = arith.constant 0 : i32
    %c0_i32_0 = arith.constant 0 : i32
    %c0_i32_1 = arith.constant 0 : i32
    return %c0_i32, %c0_i32_0 : i32, i32
  }
  func.func @transform_2(%arg0: i32) -> (i32, i32) {
    %c0_i32 = arith.constant 0 : i32
    %c0_i32_0 = arith.constant 0 : i32
    %c0_i32_1 = arith.constant 0 : i32
    return %c0_i32, %c0_i32_0 : i32, i32
  }
  func.func @transform_3(%arg0: i32) -> (i32, i32) {
    %c0_i32 = arith.constant 0 : i32
    %c0_i32_0 = arith.constant 0 : i32
    %c0_i32_1 = arith.constant 0 : i32
    return %c0_i32, %c0_i32_0 : i32, i32
  }
  func.func @transform_4(%arg0: i32) -> (i32, i32) {
    %c0_i32 = arith.constant 0 : i32
    %c0_i32_0 = arith.constant 0 : i32
    %c0_i32_1 = arith.constant 0 : i32
    return %c0_i32, %c0_i32_0 : i32, i32
  }
  func.func @transform_5(%arg0: i32) -> (i32, i32, i32) {
    %c0_i32 = arith.constant 0 : i32
    %c0_i32_0 = arith.constant 0 : i32
    %c0_i32_1 = arith.constant 0 : i32
    return %arg0, %c0_i32, %c0_i32_0 : i32, i32, i32
  }
}

</mosaic_0001>

<llo_original>
// kernel: tpu_custom_call.1
$region0: #{tpu_custom_call.1}
  #allocation0 [shape = 'u32[]', space=smem, size = 0x4, offset = 0x4, fixed_abs, tag = 'smem constant byte address 0x4 - core index']
  #allocation1 [shape = 'u32[144,128]{1,0:T(1,128)}', space=vmem, size = 0x12000, scoped, tag = 'internal scratch']
  %s0 = inlined_call_operand.hbm [shape: f32[2,8,256], index: 0, kind: input, shape index: {}]
  %s1 = inlined_call_operand.vmem [shape: f32[2,8], index: 1, kind: input, shape index: {}]
  %s2 = inlined_call_operand.vmem [shape: f32[2,1], index: 2, kind: input, shape index: {}]
  %s3 = inlined_call_operand.vmem [shape: f32[8,2], index: 3, kind: input, shape index: {}]
  %s4 = inlined_call_operand.vmem [shape: f32[8,1], index: 4, kind: input, shape index: {}]
  %s5 = inlined_call_operand.hbm [shape: f32[2,8,256], index: 5, kind: output, shape index: {}]
  %s6 = sld [smem:[#allocation0]]
  $region34: #{tpu_custom_call.1} parent=0
    _
  %s8 = ssub.s32 1, %s6
  %s9 = scalar_select 0, %s8, %s6
  $region1: #{tpu_custom_call.1} parent=0
    #allocation2 [shape = 'u8[16384]{0}', space=vmem, size = 0x4000, scoped, tag = 'input window, operand 0, single buffered']
    #allocation3 [shape = 's32[1]{0}', space=sflag, size = 0x4, scoped, tag = 'scoped memory for tpu_custom_call.1']
    #allocation4 [shape = 's32[1]{0}', space=sflag, size = 0x4, scoped, tag = 'scoped memory for tpu_custom_call.1']
    #allocation5 [shape = 'u8[16384]{0}', space=vmem, size = 0x4000, scoped, tag = 'output window, operand 0, single buffered']
    %10 = vsyncpa [#allocation3], 0
    %11 = vsyncpa [#allocation4], 0
    // Predicated region
    $region2: #{tpu_custom_call.1} parent=1 // pred_check
      _
    $region3: #{tpu_custom_call.1} parent=1 // pred_check_branch
      %13 = sbr.rel (0) target = $region5
    $region4: #{tpu_custom_call.1} parent=1 // pred_region
      %s15 = ssub.s32 512, 512
      %16 = vsyncadd [#allocation3], %s15
      %s17 = sshll.u32 [#allocation2], 4
      %s18 = int_to_ptr.vmem [resolvable:$true] %s17
      %23 = dma.hbm_to_vmem [thread:$0]  %s0, 512, %s18, [#allocation3], 256, 256, 16
    $region5: #{tpu_custom_call.1} parent=1 // pred_fallthru
      _
    // Predicated region
    $region6: #{tpu_custom_call.1} parent=1 // pred_check
      _
    $region7: #{tpu_custom_call.1} parent=1 // pred_check_branch
      %25 = sbr.rel (0) target = $region9
    $region8: #{tpu_custom_call.1} parent=1 // pred_region
      _
    $region9: #{tpu_custom_call.1} parent=1 // pred_fallthru
      _
    // Predicated region
    $region10: #{tpu_custom_call.1} parent=1 // pred_check
      _
    $region11: #{tpu_custom_call.1} parent=1 // pred_check_branch
      %27 = sbr.rel (0) target = $region13
    $region12: #{tpu_custom_call.1} parent=1 // pred_region
      _
    $region13: #{tpu_custom_call.1} parent=1 // pred_fallthru
      _
    // Predicated region
    $region14: #{tpu_custom_call.1} parent=1 // pred_check
      _
    $region15: #{tpu_custom_call.1} parent=1 // pred_check_branch
      %29 = sbr.rel (0) target = $region17
    $region16: #{tpu_custom_call.1} parent=1 // pred_region
      _
    $region17: #{tpu_custom_call.1} parent=1 // pred_fallthru
      _
    // Predicated region
    $region18: #{tpu_custom_call.1} parent=1 // pred_check
      _
    $region19: #{tpu_custom_call.1} parent=1 // pred_check_branch
      %31 = sbr.rel (0) target = $region21
    $region20: #{tpu_custom_call.1} parent=1 // pred_region
      _
    $region21: #{tpu_custom_call.1} parent=1 // pred_fallthru
      _
    // Predicated region
    $region22: #{tpu_custom_call.1} parent=1 // pred_check
      _
    $region23: #{tpu_custom_call.1} parent=1 // pred_check_branch
      %33 = sbr.rel (0) target = $region25
    $region24: #{tpu_custom_call.1} parent=1 // pred_region
      %34 = dma.done [#allocation3], 512
    $region25: #{tpu_custom_call.1} parent=1 // pred_fallthru
      _
    %v35 = vld [vmem:[%s1] sm:$0x3]
    %v36 = vld [vmem:[%s2] sm:$0x3]
    %v37 = vld [vmem:[%s3] sm:$0xff]
    %v38 = vld [vmem:[%s4] sm:$0xff]
    %v39 = vld [vmem:[#allocation2] sm:$0xff]
    %v40 = vld [vmem:[#allocation2 + $0x8] sm:$0xff]
    %v41 = vadd.f32 %v39, %v40
    %42 = vadd.xlane.f32.xlu0 %v41
    %v43 = vpop.xlane.xlu0 %42
    %v44 = vmul.f32 %v43, 0.00390625
    %vm45 = vcmask 64512
    %v47 = vsel %vm45, %v35, 0
    %49 = vmatprep.subr.mxu0 0.0
    %50 = vmatpush1.msra.mxu0 0.0
    %51 = vmatprep.subr.mxu0 0.0
    %52 = vmatpush1.msra.mxu0 0.0
    %53 = vmatprep.subr.mxu0 0.0
    %54 = vmatpush1.msra.mxu0 0.0
    %55 = vmatprep.subr.mxu0 0.0
    %56 = vmatpush1.msra.mxu0 0.0
    %57 = vmatprep.subr.mxu0 0.0
    %58 = vmatpush1.msra.mxu0 0.0
    %59 = vmatprep.subr.mxu0 0.0
    %60 = vmatpush1.msra.mxu0 0.0
    %61 = vmatprep.subr.mxu0 0.0
    %62 = vmatpush1.msra.mxu0 0.0
    %63 = vmatprep.subr.mxu0 0.0
    %64 = vmatpush1.msra.mxu0 0.0
    %65 = vmatprep.subr.mxu0 0.0
    %66 = vmatpush1.msra.mxu0 0.0
    %67 = vmatprep.subr.mxu0 0.0
    %68 = vmatpush1.msra.mxu0 0.0
    %69 = vmatprep.subr.mxu0 0.0
    %70 = vmatpush1.msra.mxu0 0.0
    %71 = vmatprep.subr.mxu0 0.0
    %72 = vmatpush1.msra.mxu0 0.0
    %73 = vmatprep.subr.mxu0 0.0
    %74 = vmatpush1.msra.mxu0 0.0
    %75 = vmatprep.subr.mxu0 0.0
    %76 = vmatpush1.msra.mxu0 0.0
    %77 = vmatprep.subr.mxu0 0.0
    %78 = vmatpush1.msra.mxu0 0.0
    %79 = vmatprep.subr.mxu0 0.0
    %80 = vmatpush1.msra.mxu0 %v44
    %81 = vmatprep.subr.mxu0 0.0
    %82 = vmatpush2.msra.mxu0 0.0
    %83 = vmatprep.subr.mxu0 0.0
    %84 = vmatpush2.msra.mxu0 0.0
    %85 = vmatprep.subr.mxu0 0.0
    %86 = vmatpush2.msra.mxu0 0.0
    %87 = vmatprep.subr.mxu0 0.0
    %88 = vmatpush2.msra.mxu0 0.0
    %89 = vmatprep.subr.mxu0 0.0
    %90 = vmatpush2.msra.mxu0 0.0
    %91 = vmatprep.subr.mxu0 0.0
    %92 = vmatpush2.msra.mxu0 0.0
    %93 = vmatprep.subr.mxu0 0.0
    %94 = vmatpush2.msra.mxu0 0.0
    %95 = vmatprep.subr.mxu0 0.0
    %96 = vmatpush2.msra.mxu0 0.0
    %97 = vmatprep.subr.mxu0 0.0
    %98 = vmatpush2.msra.mxu0 0.0
    %99 = vmatprep.subr.mxu0 0.0
    %100 = vmatpush2.msra.mxu0 0.0
    %101 = vmatprep.subr.mxu0 0.0
    %102 = vmatpush2.msra.mxu0 0.0
    %103 = vmatprep.subr.mxu0 0.0
    %104 = vmatpush2.msra.mxu0 0.0
    %105 = vmatprep.subr.mxu0 0.0
    %106 = vmatpush2.msra.mxu0 0.0
    %107 = vmatprep.subr.mxu0 0.0
    %108 = vmatpush2.msra.mxu0 0.0
    %109 = vmatprep.subr.mxu0 0.0
    %110 = vmatpush2.msra.mxu0 0.0
    %111 = vmatprep.subr.mxu0 0.0
    %112 = vmatpush2.msra.mxu0 0.0
    %113 = vmatprep.mubr.f32.mxu0 0.0
    %114 = vmatmul.mubr.f32.gmra.mxu0 %v47
    %v115 = vpop.f32.mrf.mxu0
    %v116 = vadd.f32 %v36, %v115
    %v117 = vpop.f32.mrf.mxu0
    %118 = vdwg.mxu0
    %v119 = vxor.u32 %v116, 2147483648
    %v120 = vmul.f32 %v119, 1.442695
    %v121 = vpow.pop %v120
    %v122 = vadd.f32 %v121, 1.0
    %v123 = vrcp.pop %v122
    %v124 = vmul.f32 1.0, %v123
    %v125 = vmul.f32 %v116, %v124
    %vm126 = vcmask 15360
    %v128 = vsel %vm126, %v37, 0
    %vm130 = vcmask 1041408
    %v132 = vsel %vm130, %v125, 0
    %134 = vmatprep.subr.mxu0 0.0
    %135 = vmatpush1.msra.mxu0 0.0
    %136 = vmatprep.subr.mxu0 0.0
    %137 = vmatpush1.msra.mxu0 0.0
    %138 = vmatprep.subr.mxu0 0.0
    %139 = vmatpush1.msra.mxu0 0.0
    %140 = vmatprep.subr.mxu0 0.0
    %141 = vmatpush1.msra.mxu0 0.0
    %142 = vmatprep.subr.mxu0 0.0
    %143 = vmatpush1.msra.mxu0 0.0
    %144 = vmatprep.subr.mxu0 0.0
    %145 = vmatpush1.msra.mxu0 0.0
    %146 = vmatprep.subr.mxu0 0.0
    %147 = vmatpush1.msra.mxu0 0.0
    %148 = vmatprep.subr.mxu0 0.0
    %149 = vmatpush1.msra.mxu0 0.0
    %150 = vmatprep.subr.mxu0 0.0
    %151 = vmatpush1.msra.mxu0 0.0
    %152 = vmatprep.subr.mxu0 0.0
    %153 = vmatpush1.msra.mxu0 0.0
    %154 = vmatprep.subr.mxu0 0.0
    %155 = vmatpush1.msra.mxu0 0.0
    %156 = vmatprep.subr.mxu0 0.0
    %157 = vmatpush1.msra.mxu0 0.0
    %158 = vmatprep.subr.mxu0 0.0
    %159 = vmatpush1.msra.mxu0 0.0
    %160 = vmatprep.subr.mxu0 0.0
    %161 = vmatpush1.msra.mxu0 0.0
    %162 = vmatprep.subr.mxu0 0.0
    %163 = vmatpush1.msra.mxu0 0.0
    %164 = vmatprep.subr.mxu0 0.0
    %165 = vmatpush1.msra.mxu0 %v132
    %166 = vmatprep.subr.mxu0 0.0
    %167 = vmatpush2.msra.mxu0 0.0
    %168 = vmatprep.subr.mxu0 0.0
    %169 = vmatpush2.msra.mxu0 0.0
    %170 = vmatprep.subr.mxu0 0.0
    %171 = vmatpush2.msra.mxu0 0.0
    %172 = vmatprep.subr.mxu0 0.0
    %173 = vmatpush2.msra.mxu0 0.0
    %174 = vmatprep.subr.mxu0 0.0
    %175 = vmatpush2.msra.mxu0 0.0
    %176 = vmatprep.subr.mxu0 0.0
    %177 = vmatpush2.msra.mxu0 0.0
    %178 = vmatprep.subr.mxu0 0.0
    %179 = vmatpush2.msra.mxu0 0.0
    %180 = vmatprep.subr.mxu0 0.0
    %181 = vmatpush2.msra.mxu0 0.0
    %182 = vmatprep.subr.mxu0 0.0
    %183 = vmatpush2.msra.mxu0 0.0
    %184 = vmatprep.subr.mxu0 0.0
    %185 = vmatpush2.msra.mxu0 0.0
    %186 = vmatprep.subr.mxu0 0.0
    %187 = vmatpush2.msra.mxu0 0.0
    %188 = vmatprep.subr.mxu0 0.0
    %189 = vmatpush2.msra.mxu0 0.0
    %190 = vmatprep.subr.mxu0 0.0
    %191 = vmatpush2.msra.mxu0 0.0
    %192 = vmatprep.subr.mxu0 0.0
    %193 = vmatpush2.msra.mxu0 0.0
    %194 = vmatprep.subr.mxu0 0.0
    %195 = vmatpush2.msra.mxu0 0.0
    %196 = vmatprep.subr.mxu0 0.0
    %197 = vmatpush2.msra.mxu0 0.0
    %198 = vmatprep.mubr.f32.mxu0 0.0
    %199 = vmatmul.mubr.f32.gmra.mxu0 %v128
    %v200 = vpop.f32.mrf.mxu0
    %v201 = vadd.f32 %v38, %v200
    %v202 = vpop.f32.mrf.mxu0
    %203 = vdwg.mxu0
    %v204 = vxor.u32 %v201, 2147483648
    %v205 = vmul.f32 %v204, 1.442695
    %v206 = vpow.pop %v205
    %v207 = vadd.f32 %v206, 1.0
    %v208 = vrcp.pop %v207
    %v209 = vmul.f32 1.0, %v208
    %211 = vset.pattern.permute.xlu0 0
    %212 = vperm.xlu0 %211, %v209
    %v213 = vpop.permute.xlu0 %212
    %v215 = vmul.f32 %v213, %v39
    %v216 = vmul.f32 %v213, %v40
    %217 = vst [vmem:[#allocation5] sm:$0xff] %v215
    %218 = vst [vmem:[#allocation5 + $0x8] sm:$0xff] %v216
    %s219 = scalar_lea.vmem [#allocation2], 16
    %v220 = vld [vmem:[%s219] sm:$0xff]
    %v221 = vld [vmem:[%s219 + $0x8] sm:$0xff]
    %v222 = vadd.f32 %v220, %v221
    %223 = vadd.xlane.f32.xlu0 %v222
    %v224 = vpop.xlane.xlu0 %223
    %v225 = vmul.f32 %v224, 0.00390625
    %226 = vmatprep.subr.mxu0 0.0
    %227 = vmatpush1.msra.mxu0 0.0
    %228 = vmatprep.subr.mxu0 0.0
    %229 = vmatpush1.msra.mxu0 0.0
    %230 = vmatprep.subr.mxu0 0.0
    %231 = vmatpush1.msra.mxu0 0.0
    %232 = vmatprep.subr.mxu0 0.0
    %233 = vmatpush1.msra.mxu0 0.0
    %234 = vmatprep.subr.mxu0 0.0
    %235 = vmatpush1.msra.mxu0 0.0
    %236 = vmatprep.subr.mxu0 0.0
    %237 = vmatpush1.msra.mxu0 0.0
    %238 = vmatprep.subr.mxu0 0.0
    %239 = vmatpush1.msra.mxu0 0.0
    %240 = vmatprep.subr.mxu0 0.0
    %241 = vmatpush1.msra.mxu0 0.0
    %242 = vmatprep.subr.mxu0 0.0
    %243 = vmatpush1.msra.mxu0 0.0
    %244 = vmatprep.subr.mxu0 0.0
    %245 = vmatpush1.msra.mxu0 0.0
    %246 = vmatprep.subr.mxu0 0.0
    %247 = vmatpush1.msra.mxu0 0.0
    %248 = vmatprep.subr.mxu0 0.0
    %249 = vmatpush1.msra.mxu0 0.0
    %250 = vmatprep.subr.mxu0 0.0
    %251 = vmatpush1.msra.mxu0 0.0
    %252 = vmatprep.subr.mxu0 0.0
    %253 = vmatpush1.msra.mxu0 0.0
    %254 = vmatprep.subr.mxu0 0.0
    %255 = vmatpush1.msra.mxu0 0.0
    %256 = vmatprep.subr.mxu0 0.0
    %257 = vmatpush1.msra.mxu0 %v225
    %258 = vmatprep.subr.mxu0 0.0
    %259 = vmatpush2.msra.mxu0 0.0
    %260 = vmatprep.subr.mxu0 0.0
    %261 = vmatpush2.msra.mxu0 0.0
    %262 = vmatprep.subr.mxu0 0.0
    %263 = vmatpush2.msra.mxu0 0.0
    %264 = vmatprep.subr.mxu0 0.0
    %265 = vmatpush2.msra.mxu0 0.0
    %266 = vmatprep.subr.mxu0 0.0
    %267 = vmatpush2.msra.mxu0 0.0
    %268 = vmatprep.subr.mxu0 0.0
    %269 = vmatpush2.msra.mxu0 0.0
    %270 = vmatprep.subr.mxu0 0.0
    %271 = vmatpush2.msra.mxu0 0.0
    %272 = vmatprep.subr.mxu0 0.0
    %273 = vmatpush2.msra.mxu0 0.0
    %274 = vmatprep.subr.mxu0 0.0
    %275 = vmatpush2.msra.mxu0 0.0
    %276 = vmatprep.subr.mxu0 0.0
    %277 = vmatpush2.msra.mxu0 0.0
    %278 = vmatprep.subr.mxu0 0.0
    %279 = vmatpush2.msra.mxu0 0.0
    %280 = vmatprep.subr.mxu0 0.0
    %281 = vmatpush2.msra.mxu0 0.0
    %282 = vmatprep.subr.mxu0 0.0
    %283 = vmatpush2.msra.mxu0 0.0
    %284 = vmatprep.subr.mxu0 0.0
    %285 = vmatpush2.msra.mxu0 0.0
    %286 = vmatprep.subr.mxu0 0.0
    %287 = vmatpush2.msra.mxu0 0.0
    %288 = vmatprep.subr.mxu0 0.0
    %289 = vmatpush2.msra.mxu0 0.0
    %290 = vmatprep.mubr.f32.mxu0 0.0
    %291 = vmatmul.mubr.f32.gmra.mxu0 %v47
    %v292 = vpop.f32.mrf.mxu0
    %v293 = vadd.f32 %v36, %v292
    %v294 = vpop.f32.mrf.mxu0
    %295 = vdwg.mxu0
    %v296 = vxor.u32 %v293, 2147483648
    %v297 = vmul.f32 %v296, 1.442695
    %v298 = vpow.pop %v297
    %v299 = vadd.f32 %v298, 1.0
    %v300 = vrcp.pop %v299
    %v301 = vmul.f32 1.0, %v300
    %v302 = vmul.f32 %v293, %v301
    %v304 = vsel %vm130, %v302, 0
    %306 = vmatprep.subr.mxu0 0.0
    %307 = vmatpush1.msra.mxu0 0.0
    %308 = vmatprep.subr.mxu0 0.0
    %309 = vmatpush1.msra.mxu0 0.0
    %310 = vmatprep.subr.mxu0 0.0
    %311 = vmatpush1.msra.mxu0 0.0
    %312 = vmatprep.subr.mxu0 0.0
    %313 = vmatpush1.msra.mxu0 0.0
    %314 = vmatprep.subr.mxu0 0.0
    %315 = vmatpush1.msra.mxu0 0.0
    %316 = vmatprep.subr.mxu0 0.0
    %317 = vmatpush1.msra.mxu0 0.0
    %318 = vmatprep.subr.mxu0 0.0
    %319 = vmatpush1.msra.mxu0 0.0
    %320 = vmatprep.subr.mxu0 0.0
    %321 = vmatpush1.msra.mxu0 0.0
    %322 = vmatprep.subr.mxu0 0.0
    %323 = vmatpush1.msra.mxu0 0.0
    %324 = vmatprep.subr.mxu0 0.0
    %325 = vmatpush1.msra.mxu0 0.0
    %326 = vmatprep.subr.mxu0 0.0
    %327 = vmatpush1.msra.mxu0 0.0
    %328 = vmatprep.subr.mxu0 0.0
    %329 = vmatpush1.msra.mxu0 0.0
    %330 = vmatprep.subr.mxu0 0.0
    %331 = vmatpush1.msra.mxu0 0.0
    %332 = vmatprep.subr.mxu0 0.0
    %333 = vmatpush1.msra.mxu0 0.0
    %334 = vmatprep.subr.mxu0 0.0
    %335 = vmatpush1.msra.mxu0 0.0
    %336 = vmatprep.subr.mxu0 0.0
    %337 = vmatpush1.msra.mxu0 %v304
    %338 = vmatprep.subr.mxu0 0.0
    %339 = vmatpush2.msra.mxu0 0.0
    %340 = vmatprep.subr.mxu0 0.0
    %341 = vmatpush2.msra.mxu0 0.0
    %342 = vmatprep.subr.mxu0 0.0
    %343 = vmatpush2.msra.mxu0 0.0
    %344 = vmatprep.subr.mxu0 0.0
    %345 = vmatpush2.msra.mxu0 0.0
    %346 = vmatprep.subr.mxu0 0.0
    %347 = vmatpush2.msra.mxu0 0.0
    %348 = vmatprep.subr.mxu0 0.0
    %349 = vmatpush2.msra.mxu0 0.0
    %350 = vmatprep.subr.mxu0 0.0
    %351 = vmatpush2.msra.mxu0 0.0
    %352 = vmatprep.subr.mxu0 0.0
    %353 = vmatpush2.msra.mxu0 0.0
    %354 = vmatprep.subr.mxu0 0.0
    %355 = vmatpush2.msra.mxu0 0.0
    %356 = vmatprep.subr.mxu0 0.0
    %357 = vmatpush2.msra.mxu0 0.0
    %358 = vmatprep.subr.mxu0 0.0
    %359 = vmatpush2.msra.mxu0 0.0
    %360 = vmatprep.subr.mxu0 0.0
    %361 = vmatpush2.msra.mxu0 0.0
    %362 = vmatprep.subr.mxu0 0.0
    %363 = vmatpush2.msra.mxu0 0.0
    %364 = vmatprep.subr.mxu0 0.0
    %365 = vmatpush2.msra.mxu0 0.0
    %366 = vmatprep.subr.mxu0 0.0
    %367 = vmatpush2.msra.mxu0 0.0
    %368 = vmatprep.subr.mxu0 0.0
    %369 = vmatpush2.msra.mxu0 0.0
    %370 = vmatprep.mubr.f32.mxu0 0.0
    %371 = vmatmul.mubr.f32.gmra.mxu0 %v128
    %v372 = vpop.f32.mrf.mxu0
    %v373 = vadd.f32 %v38, %v372
    %v374 = vpop.f32.mrf.mxu0
    %375 = vdwg.mxu0
    %v376 = vxor.u32 %v373, 2147483648
    %v377 = vmul.f32 %v376, 1.442695
    %v378 = vpow.pop %v377
    %v379 = vadd.f32 %v378, 1.0
    %v380 = vrcp.pop %v379
    %v381 = vmul.f32 1.0, %v380
    %383 = vset.pattern.permute.xlu0 0
    %384 = vperm.xlu0 %383, %v381
    %v385 = vpop.permute.xlu0 %384
    %v387 = vmul.f32 %v385, %v220
    %v388 = vmul.f32 %v385, %v221
    %s389 = scalar_lea.vmem [#allocation5], 16
    %390 = vst [vmem:[%s389] sm:$0xff] %v387
    %391 = vst [vmem:[%s389 + $0x8] sm:$0xff] %v388
    // Predicated region
    $region26: #{tpu_custom_call.1} parent=1 // pred_check
      _
    $region27: #{tpu_custom_call.1} parent=1 // pred_check_branch
      %393 = sbr.rel (0) target = $region29
    $region28: #{tpu_custom_call.1} parent=1 // pred_region
      %s395 = ssub.s32 512, 512
      %396 = vsyncadd [#allocation4], %s395
      %s397 = sshll.u32 [#allocation5], 4
      %s398 = int_to_ptr.vmem [resolvable:$true] %s397
      %403 = dma.vmem_to_hbm [thread:$0]  %s398, 512, %s5, [#allocation4], 256, 256, 16
    $region29: #{tpu_custom_call.1} parent=1 // pred_fallthru
      _
    // Predicated region
    $region30: #{tpu_custom_call.1} parent=1 // pred_check
      _
    $region31: #{tpu_custom_call.1} parent=1 // pred_check_branch
      %405 = sbr.rel (0) target = $region33
    $region32: #{tpu_custom_call.1} parent=1 // pred_region
      %406 = dma.done [#allocation4], 512
    $region33: #{tpu_custom_call.1} parent=1 // pred_fallthru
      _
    %407 = vsyncpa [#allocation3], 1
    %408 = vsyncpa [#allocation4], 1

</llo_original>
